<compile_context>
chip_gen: v7x
topology: tpu7x:2x2x1
jax: 0.10.0
libtpu: 0.0.40
codegen_flags: <defaults>
</compile_context>

<pallas_src>
import jax
import jax.numpy as jnp
from jax.experimental import pallas as pl
from jax.experimental.pallas import tpu as pltpu


def _inverse_transform_kernel(const_ref, x_ref, o_ref):
    c = const_ref[...].astype(jnp.float32)            # (row_tile, 4)
    s1 = c[:, 0:1]                                     # old_std
    b1 = c[:, 1:2]                                     # old_mean
    s2 = c[:, 2:3]                                     # 1 / new_std
    b2 = c[:, 3:4]                                     # -new_mean / new_std
    x = x_ref[...].astype(jnp.float32)                 # (row_tile, col_tile)
    y = jnp.clip(x * s1 + b1, 0.0, 1.0)                # unnormalize + clamp
    o_ref[...] = (y * s2 + b2).astype(o_ref.dtype)     # renormalize


def _plan_for_device():
    """Per-generation block byte budget and VMEM limit (safe fallbacks)."""
    kind = ""
    try:
        kind = jax.devices()[0].device_kind.lower()
    except Exception:
        pass
    if "v7" in kind:
        return 8 << 20, 48 << 20     # 4x8 MiB double-buffered < 48 < 64 MiB phys
    if "v6" in kind:
        return 4 << 20, 32 << 20     # 16 MiB double-buffered, default scoped limit
    if "v5" in kind:
        return 3 << 20, 24 << 20     # 12 MiB double-buffered, raise 16 MiB default
    return 2 << 20, 24 << 20         # conservative fallback


def _choose_tiles(R, L, itemsize, target_bytes):
    """Pick (row_tile, col_tile).

    Prefer full-width contiguous blocks (col_tile = L) and grow row_tile in
    dtype-packing sublane multiples toward the byte budget.  Only split
    columns (multiples of 128) when one row-group of full width already
    exceeds the budget.  Partial edge blocks are handled by Pallas.
    """
    sub = max(8, 32 // max(itemsize, 1))        # 8 f32, 16 bf16/f16, 32 int8/fp8
    target_elems = max(sub * 128, target_bytes // itemsize)

    row_tile = R if R <= sub else sub           # full extent if tiny (legality)
    col_tile = L

    if row_tile * L <= target_elems:
        # Full-width blocks: grow rows toward the budget.
        rows_wanted = max(row_tile, target_elems // max(L, 1))
        if rows_wanted >= R:
            row_tile = R
        elif R > sub:
            row_tile = min(R, max(sub, (rows_wanted // sub) * sub))
    else:
        # Even one sublane group of full width exceeds the budget: split lanes.
        col_budget = max(128, target_elems // max(row_tile, 1))
        col_tile = min(L, (col_budget // 128) * 128)

    # Guarantee >= 2 grid steps when possible so v7x's 2 TCs both get work.
    if row_tile >= R and col_tile >= L:
        if R >= 2 * sub:
            half = (R + 1) // 2
            rt = ((half + sub - 1) // sub) * sub
            if rt < R:
                row_tile = rt
        elif L >= 256:
            half = (L + 1) // 2
            ct = ((half + 127) // 128) * 128
            if ct < L:
                col_tile = ct
    return row_tile, col_tile


def inverse_transform(x, old_mean, old_std, new_mean, new_std):
    """x: (N, 3, H, W). mean/std: (3,). Returns (N, 3, H, W)."""
    N, C, H, W = x.shape
    assert C == 3, "InverseTransform assumes 3-channel images (mean.view(1,3,1,1))"
    R, L = N * C, H * W
    dtype = x.dtype
    itemsize = jnp.dtype(dtype).itemsize

    # Lane-dense 2-D view; reshape of a contiguous array is free in XLA.
    x2 = x.reshape(R, L)

    # Fused per-channel constants in float32, one row per (image, channel):
    #   columns = [old_std, old_mean, 1/new_std, -new_mean/new_std]
    old_std32 = old_std.astype(jnp.float32)
    old_mean32 = old_mean.astype(jnp.float32)
    new_std32 = new_std.astype(jnp.float32)
    new_mean32 = new_mean.astype(jnp.float32)
    inv_new_std = 1.0 / new_std32
    consts_c = jnp.stack(
        [old_std32, old_mean32, inv_new_std, -new_mean32 * inv_new_std], axis=1
    )                                            # (3, 4)
    consts = jnp.tile(consts_c, (N, 1))          # (R, 4)

    target_bytes, vmem_limit = _plan_for_device()
    row_tile, col_tile = _choose_tiles(R, L, itemsize, target_bytes)
    grid = (pl.cdiv(R, row_tile), pl.cdiv(L, col_tile))

    const_spec = pl.BlockSpec((row_tile, 4), lambda r, c: (r, 0))
    data_spec = pl.BlockSpec((row_tile, col_tile), lambda r, c: (r, c))

    cost = pl.CostEstimate(
        flops=6 * R * L,
        transcendentals=0,
        bytes_accessed=2 * R * L * itemsize + R * 4 * 4,
    )

    out2 = pl.pallas_call(
        _inverse_transform_kernel,
        out_shape=jax.ShapeDtypeStruct((R, L), dtype),
        grid_spec=pl.GridSpec(
            grid=grid,
            in_specs=[const_spec, data_spec],
            out_specs=data_spec,
        ),
        compiler_params=pltpu.CompilerParams(
            dimension_semantics=("parallel", "parallel"),
            vmem_limit_bytes=vmem_limit,
        ),
        cost_estimate=cost,
    )(consts, x2)

    return out2.reshape(N, C, H, W)


def inverse_transform_ref(x, old_mean, old_std, new_mean, new_std):
    """Pure-JAX reference matching the PyTorch forward pass."""
    y = x * old_std.reshape(1, 3, 1, 1) + old_mean.reshape(1, 3, 1, 1)
    y = jnp.clip(y, 0.0, 1.0)
    return (y - new_mean.reshape(1, 3, 1, 1)) / new_std.reshape(1, 3, 1, 1)


if __name__ == "__main__":
    key = jax.random.PRNGKey(0)
    N, C, H, W = 2, 3, 16, 16
    x = jax.random.normal(key, (N, C, H, W), dtype=jnp.float32)

    # Deterministic "parameters": old (source model) and new (target model) stats.
    old_mean = jnp.array([0.485, 0.456, 0.406], dtype=jnp.float32)
    old_std = jnp.array([0.229, 0.224, 0.225], dtype=jnp.float32)
    new_mean = jnp.array([0.5, 0.5, 0.5], dtype=jnp.float32)
    new_std = jnp.array([0.5, 0.5, 0.5], dtype=jnp.float32)

    out = inverse_transform(x, old_mean, old_std, new_mean, new_std)
    out = jax.block_until_ready(out)

    ref = inverse_transform_ref(x, old_mean, old_std, new_mean, new_std)
    assert out.shape == (N, C, H, W)
    assert jnp.max(jnp.abs(out - ref)) < 1e-5

    print("KERNEL_OK")
</pallas_src>

<mosaic_0001>
module attributes {stable_mosaic.version = 11 : i64} {
  func.func @_inverse_transform_kernel(%arg0: i32, %arg1: i32, %arg2: memref<6x4xf32, #tpu.memory_space<vmem>>, %arg3: memref<6x128xf32, #tpu.memory_space<vmem>>, %arg4: memref<6x128xf32, #tpu.memory_space<vmem>>) attributes {dimension_semantics = [#tpu.dimension_semantics<parallel>, #tpu.dimension_semantics<parallel>], iteration_bounds = array<i64: 1, 2>, scalar_prefetch = 0 : i64, scratch_operands = 0 : i64, tpu.core_type = #tpu.core_type<tc>, window_params = [{transform_indices = @transform_0, window_bounds = array<i64: 6, 4>}, {transform_indices = @transform_1, window_bounds = array<i64: 6, 128>}, {transform_indices = @transform_2, window_bounds = array<i64: 6, 128>}]} {
    %c0 = arith.constant 0 : index
    %c0_0 = arith.constant 0 : index
    %0 = vector.load %arg2[%c0, %c0_0] : memref<6x4xf32, #tpu.memory_space<vmem>>, vector<6x4xf32>
    %1 = vector.extract_strided_slice %0 {offsets = [0, 0], sizes = [6, 1], strides = [1, 1]} : vector<6x4xf32> to vector<6x1xf32>
    %2 = vector.extract_strided_slice %0 {offsets = [0, 1], sizes = [6, 1], strides = [1, 1]} : vector<6x4xf32> to vector<6x1xf32>
    %3 = vector.extract_strided_slice %0 {offsets = [0, 2], sizes = [6, 1], strides = [1, 1]} : vector<6x4xf32> to vector<6x1xf32>
    %4 = vector.extract_strided_slice %0 {offsets = [0, 3], sizes = [6, 1], strides = [1, 1]} : vector<6x4xf32> to vector<6x1xf32>
    %c0_1 = arith.constant 0 : index
    %c0_2 = arith.constant 0 : index
    %5 = vector.load %arg3[%c0_1, %c0_2] : memref<6x128xf32, #tpu.memory_space<vmem>>, vector<6x128xf32>
    %6 = vector.broadcast %1 : vector<6x1xf32> to vector<6x128xf32>
    %7 = arith.mulf %5, %6 : vector<6x128xf32>
    %8 = vector.broadcast %2 : vector<6x1xf32> to vector<6x128xf32>
    %9 = arith.addf %7, %8 : vector<6x128xf32>
    %cst = arith.constant 0.000000e+00 : f32
    %cst_3 = arith.constant 1.000000e+00 : f32
    %10 = vector.broadcast %cst : f32 to vector<6x128xf32>
    %11 = arith.maximumf %10, %9 : vector<6x128xf32>
    %12 = vector.broadcast %cst_3 : f32 to vector<6x128xf32>
    %13 = arith.minimumf %12, %11 : vector<6x128xf32>
    %14 = vector.broadcast %3 : vector<6x1xf32> to vector<6x128xf32>
    %15 = arith.mulf %13, %14 : vector<6x128xf32>
    %16 = vector.broadcast %4 : vector<6x1xf32> to vector<6x128xf32>
    %17 = arith.addf %15, %16 : vector<6x128xf32>
    %c0_4 = arith.constant 0 : index
    %c0_5 = arith.constant 0 : index
    %18 = vector.load %arg4[%c0_4, %c0_5] : memref<6x128xf32, #tpu.memory_space<vmem>>, vector<6x128xf32>
    tpu.vector_store %arg4[%c0_4, %c0_5], %17 {strides = array<i32>} : memref<6x128xf32, #tpu.memory_space<vmem>>, vector<6x128xf32>,
    return
  }
  func.func @transform_0(%arg0: i32, %arg1: i32) -> (i32, i32) {
    %c0_i32 = arith.constant 0 : i32
    %c0_i32_0 = arith.constant 0 : i32
    return %arg0, %c0_i32 : i32, i32
  }
  func.func @transform_1(%arg0: i32, %arg1: i32) -> (i32, i32) {
    %c0_i32 = arith.constant 0 : i32
    return %arg0, %arg1 : i32, i32
  }
  func.func @transform_2(%arg0: i32, %arg1: i32) -> (i32, i32) {
    %c0_i32 = arith.constant 0 : i32
    return %arg0, %arg1 : i32, i32
  }
}

</mosaic_0001>

<llo_original>
// kernel: tpu_custom_call.1
$region0: #{tpu_custom_call.1}
  #allocation0 [shape = 'u32[]', space=smem, size = 0x4, offset = 0x4, fixed_abs, tag = 'smem constant byte address 0x4 - core index']
  #allocation1 [shape = 'u32[144,128]{1,0:T(1,128)}', space=vmem, size = 0x12000, scoped, tag = 'internal scratch']
  %s0 = inlined_call_operand.vmem [shape: f32[6,4], index: 0, kind: input, shape index: {}]
  %s1 = inlined_call_operand.hbm [shape: f32[6,256], index: 1, kind: input, shape index: {}]
  %s2 = inlined_call_operand.hbm [shape: f32[6,256], index: 2, kind: output, shape index: {}]
  %s3 = sld [smem:[#allocation0]]
  $region45: #{tpu_custom_call.1} parent=0
    _
  %s5 = ssub.s32 1, %s3
  %s6 = scalar_select 0, %s5, %s3
  $region1: #{tpu_custom_call.1} parent=0
    #allocation2 [shape = 'u8[8192]{0}', space=vmem, size = 0x2000, scoped, tag = 'input window, operand 1']
    #allocation3 [shape = 's32[2]{0}', space=sflag, size = 0x8, scoped, tag = 'scoped memory for tpu_custom_call.1']
    #allocation4 [shape = 's32[2]{0}', space=sflag, size = 0x8, scoped, tag = 'scoped memory for tpu_custom_call.1']
    #allocation5 [shape = 'u8[8192]{0}', space=vmem, size = 0x2000, scoped, tag = 'output window, operand 0']
    %7 = vsyncpa [#allocation3], 0
    %s8 = scalar_lea.sflag [#allocation3], 1
    %9 = vsyncpa %s8, 0
    %10 = vsyncpa [#allocation4], 0
    %s11 = scalar_lea.sflag [#allocation4], 1
    %12 = vsyncpa %s11, 0
    loop: start=0, step=1, limit=4
    $region2: #{tpu_custom_call.1} parent=1 // loop_pre_header
      _
    $region3: #{tpu_custom_call.1} parent=1 // loop_header
      %s14 = sphi 0, %s18
      %p15 = scmp.ge.s32.totalorder %s14, 4
      %s21 = sphi 0, %s33
      %s22 = sphi 0, %s29
      %s23 = sphi 0, %s21
      %s24 = sphi 0, %s22
      %s25 = sphi 0, %s23
      %s26 = sphi 0, %s24
      %s36 = sphi 0, %s38
      %s39 = sphi 0, %s36
      %s40 = sphi 0, %s39
      %s56 = sphi 0, %s40
      %s64 = sphi 0, %s66
      %s67 = sphi 0, %s64
      %s68 = sphi 0, %s67
      %s84 = sphi 0, %s68
      %s92 = sphi 0, %s94
      %s95 = sphi 0, %s92
      %s96 = sphi 0, %s95
      %s112 = sphi 0, %s96
    $region4: #{tpu_custom_call.1} parent=1 // loop_header_branch
      %17 = sbr.rel (%p15) target = $region8
    $region5: #{tpu_custom_call.1} parent=1 // loop_body
      %s19 = ssub.s32 %s14, 1
      %s20 = ssub.s32 %s14, 2
      %s27 = sadd.s32 1, %s22
      %p28 = scmp.ge.s32.totalorder %s27, 2
      %s29 = scalar_select %p28, 0, %s27
      %s30 = sadd.s32 1, %s21
      %s31 = scalar_select %p28, %s30, %s21
      %p32 = scmp.ge.s32.totalorder %s31, 1
      %s33 = scalar_select %p32, 0, %s31
      %s34 = ssub.s32 %s21, %s33
      %p35 = scmp.eq.s32.totalorder %s34, 0
      %s37 = sadd.s32 %s36, 1
      %s38 = scalar_select %p35, %s36, %s37
      %p41 = pneg %p35
      %p42 = scmp.eq.s32.totalorder %s14, 1
      %p43 = por %p41, %p42
      %p44 = scmp.ne.s32.totalorder %s36, %s39
      %p45 = scmp.eq.s32.totalorder %s14, 0
      %p46 = por %p44, %p45
      %p47 = scmp.ne.s32.totalorder %s36, %s39
      %p48 = scmp.eq.s32.totalorder %s19, 1
      %p49 = por %p47, %p48
      %p50 = scmp.ne.s32.totalorder %s39, %s40
      %p51 = scmp.eq.s32.totalorder %s19, 0
      %p52 = por %p50, %p51
      %p53 = scmp.ne.s32.totalorder %s39, %s40
      %p54 = scmp.eq.s32.totalorder %s20, 1
      %p55 = por %p53, %p54
      %p57 = scmp.ne.s32.totalorder %s40, %s56
      %p58 = scmp.eq.s32.totalorder %s20, 0
      %p59 = por %p57, %p58
      %s60 = ssub.s32 %s21, %s33
      %s61 = ssub.s32 %s22, %s29
      %s62 = sor.u32 %s60, %s61
      %p63 = scmp.eq.s32.totalorder %s62, 0
      %s65 = sadd.s32 %s64, 1
      %s66 = scalar_select %p63, %s64, %s65
      %p69 = pneg %p63
      %p70 = scmp.eq.s32.totalorder %s14, 1
      %p71 = por %p69, %p70
      %p72 = scmp.ne.s32.totalorder %s64, %s67
      %p73 = scmp.eq.s32.totalorder %s14, 0
      %p74 = por %p72, %p73
      %p75 = scmp.ne.s32.totalorder %s64, %s67
      %p76 = scmp.eq.s32.totalorder %s19, 1
      %p77 = por %p75, %p76
      %p78 = scmp.ne.s32.totalorder %s67, %s68
      %p79 = scmp.eq.s32.totalorder %s19, 0
      %p80 = por %p78, %p79
      %p81 = scmp.ne.s32.totalorder %s67, %s68
      %p82 = scmp.eq.s32.totalorder %s20, 1
      %p83 = por %p81, %p82
      %p85 = scmp.ne.s32.totalorder %s68, %s84
      %p86 = scmp.eq.s32.totalorder %s20, 0
      %p87 = por %p85, %p86
      %s88 = ssub.s32 %s21, %s33
      %s89 = ssub.s32 %s22, %s29
      %s90 = sor.u32 %s88, %s89
      %p91 = scmp.eq.s32.totalorder %s90, 0
      %s93 = sadd.s32 %s92, 1
      %s94 = scalar_select %p91, %s92, %s93
      %p97 = pneg %p91
      %p98 = scmp.eq.s32.totalorder %s14, 1
      %p99 = por %p97, %p98
      %p100 = scmp.ne.s32.totalorder %s92, %s95
      %p101 = scmp.eq.s32.totalorder %s14, 0
      %p102 = por %p100, %p101
      %p103 = scmp.ne.s32.totalorder %s92, %s95
      %p104 = scmp.eq.s32.totalorder %s19, 1
      %p105 = por %p103, %p104
      %p106 = scmp.ne.s32.totalorder %s95, %s96
      %p107 = scmp.eq.s32.totalorder %s19, 0
      %p108 = por %p106, %p107
      %p109 = scmp.ne.s32.totalorder %s95, %s96
      %p110 = scmp.eq.s32.totalorder %s20, 1
      %p111 = por %p109, %p110
      %p113 = scmp.ne.s32.totalorder %s96, %s112
      %p114 = scmp.eq.s32.totalorder %s20, 0
      %p115 = por %p113, %p114
      %p116 = scmp.le.s32.totalorder 1, %s14
      %p117 = scmp.lt.s32.totalorder %s14, 3
      %p118 = pnand %p116, %p117
      %p119 = pneg %p118
      // Predicated region
      $region9: #{tpu_custom_call.1} parent=5 // pred_check
        _
      $region10: #{tpu_custom_call.1} parent=5 // pred_check_branch
        %121 = sbr.rel (%p118) target = $region12
      $region11: #{tpu_custom_call.1} parent=5 // pred_region
        %s122 = ssub.s32 %s14, 1
        // Predicated region
        $region13: #{tpu_custom_call.1} parent=11 // pred_check
          %p123 = pneg %p52
        $region14: #{tpu_custom_call.1} parent=11 // pred_check_branch
          %125 = sbr.rel (%p123) target = $region16
        $region15: #{tpu_custom_call.1} parent=11 // pred_region
          %p126 = scmp.lt.s32.totalorder %s23, 0
          %s127 = scalar_select %p126, %s23, 0
          %s128 = smul.addr %s127, 8
          %s129 = scalar_lea.vmem %s0, %s128
        $region16: #{tpu_custom_call.1} parent=11 // pred_fallthru
          _
      $region12: #{tpu_custom_call.1} parent=5 // pred_fallthru
        _
      %p130 = scmp.lt.s32.totalorder %s14, 2
      // Predicated region
      $region17: #{tpu_custom_call.1} parent=5 // pred_check
        %p131 = pneg %p130
      $region18: #{tpu_custom_call.1} parent=5 // pred_check_branch
        %133 = sbr.rel (%p131) target = $region20
      $region19: #{tpu_custom_call.1} parent=5 // pred_region
        // Predicated region
        $region21: #{tpu_custom_call.1} parent=19 // pred_check
          %p134 = pneg %p74
        $region22: #{tpu_custom_call.1} parent=19 // pred_check_branch
          %136 = sbr.rel (%p134) target = $region24
        $region23: #{tpu_custom_call.1} parent=19 // pred_region
          %s137 = sand.u32 %s64, 1
          %s138 = scalar_lea.sflag [#allocation3], %s137
          %s139 = sand.u32 %s64, 1
          %s140 = smul.addr %s139, 8
          %s141 = scalar_lea.vmem [#allocation2], %s140
          %s143 = ssub.s32 128, 128
          %144 = vsyncadd %s138, %s143
          %s145 = smul.addr %s21, 2
          %s146 = sadd.s32 %s22, %s145
          %s147 = smul.addr %s146, 128
          %s148 = scalar_lea.hbm %s1, %s147
          %s150 = sshll.u32 %s141, 4
          %s151 = int_to_ptr.vmem [resolvable:$true] %s150
          %153 = dma.hbm_to_vmem [thread:$0]  %s148, 128, %s151, %s138
        $region24: #{tpu_custom_call.1} parent=19 // pred_fallthru
          _
      $region20: #{tpu_custom_call.1} parent=5 // pred_fallthru
        _
      %p154 = scmp.le.s32.totalorder 1, %s14
      %p155 = scmp.lt.s32.totalorder %s14, 3
      %p156 = pnand %p154, %p155
      %p157 = pneg %p156
      // Predicated region
      $region25: #{tpu_custom_call.1} parent=5 // pred_check
        _
      $region26: #{tpu_custom_call.1} parent=5 // pred_check_branch
        %159 = sbr.rel (%p156) target = $region28
      $region27: #{tpu_custom_call.1} parent=5 // pred_region
        %s160 = ssub.s32 %s14, 1
        %s161 = sand.u32 %s67, 1
        %s162 = scalar_lea.sflag [#allocation3], %s161
        %s163 = sand.u32 %s67, 1
        %s164 = smul.addr %s163, 8
        %s165 = scalar_lea.vmem [#allocation2], %s164
        // Predicated region
        $region29: #{tpu_custom_call.1} parent=27 // pred_check
          %p166 = pneg %p80
        $region30: #{tpu_custom_call.1} parent=27 // pred_check_branch
          %168 = sbr.rel (%p166) target = $region32
        $region31: #{tpu_custom_call.1} parent=27 // pred_region
          %169 = dma.done %s162, 128
        $region32: #{tpu_custom_call.1} parent=27 // pred_fallthru
          _
        %p170 = scmp.lt.s32.totalorder %s23, 0
        %s171 = scalar_select %p170, %s23, 0
        %s172 = smul.addr %s171, 8
        %s173 = scalar_lea.vmem %s0, %s172
        %p174 = pneg %p52
        %p175 = pneg %p49
        %s176 = sand.u32 %s67, 1
        %s177 = scalar_lea.sflag [#allocation3], %s176
        %s178 = sand.u32 %s67, 1
        %s179 = smul.addr %s178, 8
        %s180 = scalar_lea.vmem [#allocation2], %s179
        %p181 = pneg %p80
        %p182 = pneg %p77
        %p183 = pneg %p108
        %p184 = pneg %p105
        %s185 = sand.u32 %s95, 1
        %s186 = scalar_lea.sflag [#allocation4], %s185
        %s187 = sand.u32 %s95, 1
        %s188 = smul.addr %s187, 8
        %s189 = scalar_lea.vmem [#allocation5], %s188
        %p190 = scmp.lt.s32.totalorder %s23, 0
        %s191 = scalar_select %p190, %s23, 0
        %s192 = smul.addr %s191, 8
        %s193 = scalar_lea.vmem %s0, %s192
        %v194 = vld [vmem:[%s193] sm:$0x3f]
        %v195 = vld [vmem:[%s165] sm:$0x3f]
        %197 = vset.pattern.permute.xlu0 0
        %198 = vperm.xlu0 %197, %v194
        %v199 = vpop.permute.xlu0 %198
        %v201 = vmul.f32 %v195, %v199
        %202 = vset.pattern.permute.xlu0 1
        %203 = vperm.xlu0 %202, %v194
        %v204 = vpop.permute.xlu0 %203
        %v206 = vadd.f32 %v201, %v204
        %v207 = vmax.f32 %v206, 0.0
        %v208 = vmin.f32 %v207, 1.0
        %209 = vset.pattern.permute.xlu0 2
        %210 = vperm.xlu0 %209, %v194
        %v211 = vpop.permute.xlu0 %210
        %v213 = vmul.f32 %v208, %v211
        %214 = vset.pattern.permute.xlu0 3
        %215 = vperm.xlu0 %214, %v194
        %v216 = vpop.permute.xlu0 %215
        %v218 = vadd.f32 %v213, %v216
        %219 = vst [vmem:[%s189] sm:$0x3f] %v218
        %s220 = sand.u32 %s95, 1
        %s221 = scalar_lea.sflag [#allocation4], %s220
        %s222 = sand.u32 %s95, 1
        %s223 = smul.addr %s222, 8
        %s224 = scalar_lea.vmem [#allocation5], %s223
        // Predicated region
        $region33: #{tpu_custom_call.1} parent=27 // pred_check
          %p225 = pneg %p105
        $region34: #{tpu_custom_call.1} parent=27 // pred_check_branch
          %227 = sbr.rel (%p225) target = $region36
        $region35: #{tpu_custom_call.1} parent=27 // pred_region
          %s229 = ssub.s32 128, 128
          %230 = vsyncadd %s221, %s229
          %s231 = smul.addr %s23, 2
          %s232 = sadd.s32 %s24, %s231
          %s233 = smul.addr %s232, 128
          %s234 = scalar_lea.hbm %s2, %s233
          %s236 = sshll.u32 %s224, 4
          %s237 = int_to_ptr.vmem [resolvable:$true] %s236
          %239 = dma.vmem_to_hbm [thread:$0]  %s237, 128, %s234, %s221
        $region36: #{tpu_custom_call.1} parent=27 // pred_fallthru
          _
      $region28: #{tpu_custom_call.1} parent=5 // pred_fallthru
        _
      %p240 = scmp.le.s32.totalorder 2, %s14
      // Predicated region
      $region37: #{tpu_custom_call.1} parent=5 // pred_check
        %p241 = pneg %p240
      $region38: #{tpu_custom_call.1} parent=5 // pred_check_branch
        %243 = sbr.rel (%p241) target = $region40
      $region39: #{tpu_custom_call.1} parent=5 // pred_region
        %s244 = ssub.s32 %s14, 2
        // Predicated region
        $region41: #{tpu_custom_call.1} parent=39 // pred_check
          %p245 = pneg %p111
        $region42: #{tpu_custom_call.1} parent=39 // pred_check_branch
          %247 = sbr.rel (%p245) target = $region44
        $region43: #{tpu_custom_call.1} parent=39 // pred_region
          %s248 = sand.u32 %s96, 1
          %s249 = scalar_lea.sflag [#allocation4], %s248
          %s250 = sand.u32 %s96, 1
          %s251 = smul.addr %s250, 8
          %s252 = scalar_lea.vmem [#allocation5], %s251
          %253 = dma.done %s249, 128
        $region44: #{tpu_custom_call.1} parent=39 // pred_fallthru
          _
      $region40: #{tpu_custom_call.1} parent=5 // pred_fallthru
        _
    $region6: #{tpu_custom_call.1} parent=1 // loop_footer
      %s18 = sadd.s32 1, %s14
    $region7: #{tpu_custom_call.1} parent=1 // loop_footer_branch
      %13 = sbr.rel target = $region3
    $region8: #{tpu_custom_call.1} parent=1 // loop_exit
      _
    %254 = vsyncpa [#allocation3], 1
    %s255 = scalar_lea.sflag [#allocation3], 1
    %256 = vsyncpa %s255, 1
    %257 = vsyncpa [#allocation4], 1
    %s258 = scalar_lea.sflag [#allocation4], 1
    %259 = vsyncpa %s258, 1

</llo_original>
